<compile_context>
chip_gen: v7x
topology: tpu7x:2x2x1
jax: 0.10.0
libtpu: 0.0.40
codegen_flags: <defaults>
</compile_context>

<pallas_src>
import jax
import jax.numpy as jnp
from jax import lax
from jax.experimental import pallas as pl
from jax.experimental.pallas import tpu as pltpu

LANE = 128      # lane width (last-dim alignment)
SUBLANE = 8     # f32 sublane height
VMEM_LIMIT_BYTES = 32 * 1024 * 1024   # explicit scoped-VMEM budget (safe on v5e/v6e/v7x)


def _round_up(x, m):
    return ((x + m - 1) // m) * m


def _const_spec(block_shape, index_map, single_buffered):
    """BlockSpec for a grid-invariant operand.

    When `single_buffered`, request buffer_count=1: its block index never changes,
    so double-buffering it is pure VMEM waste."""
    if single_buffered:
        return pl.BlockSpec(block_shape, index_map, pipeline_mode=pl.Buffered(1))
    return pl.BlockSpec(block_shape, index_map)


def _run_with_buffering_fallback(build, args):
    """Invoke build(single_buffered=True)(*args); if this JAX build rejects
    pl.Buffered(1) on a pallas_call operand, retry with default double-buffering
    (the constant operands are small, so this only costs a little VMEM)."""
    try:
        return build(True)(*args)
    except Exception:   # pragma: no cover - fallback for pipeline_mode support
        return build(False)(*args)


# ----------------------------------------------------------------------------
# Kernel 1: node embedding projection  V = H @ W   (stand-in HeteroGAT)
# ----------------------------------------------------------------------------
def node_proj_kernel(h_ref, w_ref, v_ref):
    # bf16 MXU operands, f32 accumulation; V stored f32 (it feeds f32 VPU math later).
    v_ref[...] = jnp.dot(h_ref[...].astype(jnp.bfloat16), w_ref[...],
                         preferred_element_type=jnp.float32)


def node_projection(H, W_bf16, *, tm_max=256):
    """Tiled Pallas matmul over node tiles. W (constant across tiles) is single-buffered."""
    num_nodes, in_size = H.shape
    D_pad = W_bf16.shape[1]

    tm = tm_max if num_nodes >= tm_max else _round_up(max(num_nodes, 1), SUBLANE)
    n_pad = _round_up(num_nodes, tm)
    H_p = H if n_pad == num_nodes else jnp.pad(H, ((0, n_pad - num_nodes), (0, 0)))
    grid = n_pad // tm

    def build(single_buffered):
        return pl.pallas_call(
            node_proj_kernel,
            out_shape=jax.ShapeDtypeStruct((n_pad, D_pad), jnp.float32),
            grid_spec=pltpu.PrefetchScalarGridSpec(
                num_scalar_prefetch=0,
                grid=(grid,),
                in_specs=[
                    pl.BlockSpec((tm, in_size), lambda i: (i, 0)),                 # node tile
                    _const_spec((in_size, D_pad), lambda i: (0, 0), single_buffered),  # W
                ],
                out_specs=pl.BlockSpec((tm, D_pad), lambda i: (i, 0)),
            ),
            compiler_params=pltpu.CompilerParams(
                dimension_semantics=("parallel",),
                vmem_limit_bytes=VMEM_LIMIT_BYTES,
            ),
        )

    return _run_with_buffering_fallback(build, (H_p, W_bf16))


# ----------------------------------------------------------------------------
# Kernel 2: TransE score
#   score[n, r] = sigmoid(-sqrt(||h-t||^2 + 2*(h-t).rel[r] + ||rel[r]||^2))
# ----------------------------------------------------------------------------
def transe_score_kernel(h_ref, t_ref, rel_ref, rsq_ref, out_ref):
    diff = h_ref[...] - t_ref[...]                               # [tn, D_pad] f32 (VPU)
    # Cross term on the MXU with bf16 operands (f32 accumulation); contracts the
    # hidden dim of both operands directly -> no in-kernel transpose of rel.
    cross = lax.dot_general(diff.astype(jnp.bfloat16), rel_ref[...],
                            (((1,), (1,)), ((), ())),
                            preferred_element_type=jnp.float32)   # [tn, R_pad]
    d_sq = jnp.sum(diff * diff, axis=-1, keepdims=True)           # [tn, 1] f32 (XLU)
    sq = jnp.maximum(d_sq + 2.0 * cross + rsq_ref[...], 0.0)      # guard fp negatives
    # sigmoid(-x) == 0.5 * (1 - tanh(x/2)): single EUP transcendental.
    out_ref[...] = 0.5 - 0.5 * jnp.tanh(0.5 * jnp.sqrt(sq))


def transe_scores(h, t, rel_bf16, rsq, *, tn_max=128):
    N, D_pad = h.shape
    R_pad = rel_bf16.shape[0]

    tn = tn_max if N >= tn_max else _round_up(max(N, 1), SUBLANE)
    N_pad = _round_up(N, tn)
    if N_pad != N:
        pad = ((0, N_pad - N), (0, 0))
        h = jnp.pad(h, pad)
        t = jnp.pad(t, pad)
    grid = N_pad // tn

    def build(single_buffered):
        return pl.pallas_call(
            transe_score_kernel,
            out_shape=jax.ShapeDtypeStruct((N_pad, R_pad), jnp.float32),
            grid_spec=pltpu.PrefetchScalarGridSpec(
                num_scalar_prefetch=0,
                grid=(grid,),
                in_specs=[
                    pl.BlockSpec((tn, D_pad), lambda i: (i, 0)),                       # h tile
                    pl.BlockSpec((tn, D_pad), lambda i: (i, 0)),                       # t tile
                    _const_spec((R_pad, D_pad), lambda i: (0, 0), single_buffered),    # rel (bf16)
                    _const_spec((1, R_pad), lambda i: (0, 0), single_buffered),        # ||rel||^2
                ],
                out_specs=pl.BlockSpec((tn, R_pad), lambda i: (i, 0)),
            ),
            compiler_params=pltpu.CompilerParams(
                # No cross-step state: batch tiles are independent -> megacore-parallel
                # on v7x, harmless on v5e/v6e.
                dimension_semantics=("parallel",),
                vmem_limit_bytes=VMEM_LIMIT_BYTES,
            ),
        )

    return _run_with_buffering_fallback(build, (h, t, rel_bf16, rsq))


# ----------------------------------------------------------------------------
# Full forward
# ----------------------------------------------------------------------------
def graph_score_forward(cui1, cui2, H, W, rel, *, tn_max=128):
    num_nodes, in_size = H.shape
    D = W.shape[1]
    R = rel.shape[0]
    N = cui1.shape[0]

    D_pad = _round_up(D, LANE)    # hidden dim padded to 128 lanes
    R_pad = _round_up(R, LANE)    # lane-dense score output

    # Zero-padded parameters (padded columns/rows contribute nothing to the score).
    # MXU-side parameters stored bf16; ||rel||^2 hoisted and kept exact f32.
    W_pad = jnp.zeros((in_size, D_pad), jnp.float32).at[:, :D].set(W.astype(jnp.float32))
    rel_pad = jnp.zeros((R_pad, D_pad), jnp.float32).at[:R, :D].set(rel.astype(jnp.float32))
    rsq = jnp.sum(rel_pad * rel_pad, axis=-1)[None, :]            # [1, R_pad]

    # 1) Node embeddings (stand-in HeteroGAT projection), tiled Pallas matmul.
    V = node_projection(H, W_pad.astype(jnp.bfloat16))            # [num_nodes_pad, D_pad] f32

    # 2) Endpoint gather (moves only N*D_pad floats).
    h = jnp.take(V, cui1.astype(jnp.int32), axis=0)
    t = jnp.take(V, cui2.astype(jnp.int32), axis=0)

    # 3) Batch-tiled TransE score kernel.
    out = transe_scores(h, t, rel_pad.astype(jnp.bfloat16), rsq, tn_max=tn_max)

    # Padding sliced off here for the demo; at production scale keep the lane-dense
    # [N_pad, R_pad] slab (or emit bf16) and fold the slice into the consumer.
    return out[:N, :R]


# ----------------------------------------------------------------------------
# GraphScoreEncoder wrapper (parameter setup only; forward = the two Pallas calls)
# ----------------------------------------------------------------------------
class GraphScoreEncoderPallas:
    def __init__(self, key, num_nodes, in_size, hidden_dim, label_num,
                 score_func="TransE", dropout=0.5):
        assert score_func == "TransE"  # TODO(synk): TuckER path not implemented
        self.score_func = score_func
        self.hidden_dim = hidden_dim
        self.label_num = label_num
        self.dropout = dropout  # eval mode -> identity

        k_h, k_w, k_rel = jax.random.split(key, 3)
        # synthetic node features (the `h` passed to GATEncoder)
        self.H = jax.random.normal(k_h, (num_nodes, in_size), jnp.float32)
        # deterministic stand-in "HeteroGAT" projection weight (xavier-ish scale)
        scale_w = (6.0 / (in_size + hidden_dim)) ** 0.5
        self.W_proj = jax.random.uniform(
            k_w, (in_size, hidden_dim), jnp.float32, -scale_w, scale_w)
        # relation embedding, xavier_uniform init
        scale_r = (6.0 / (label_num + hidden_dim)) ** 0.5
        self.rel = jax.random.uniform(
            k_rel, (label_num, hidden_dim), jnp.float32, -scale_r, scale_r)

    def __call__(self, cui1, cui2):
        return graph_score_forward(cui1, cui2, self.H, self.W_proj, self.rel)


# ----------------------------------------------------------------------------
# Reference (pure JAX f32, mirrors the PyTorch semantics exactly)
# ----------------------------------------------------------------------------
def reference_forward(model, cui1, cui2):
    V = model.H @ model.W_proj
    h = V[cui1]
    t = V[cui2]
    N, _ = h.shape
    R = model.rel.shape[0]
    h_exp = jnp.repeat(h, R, axis=0)                      # repeat_interleave
    t_exp = jnp.repeat(t, R, axis=0)
    r_exp = jnp.tile(model.rel, (N, 1))                   # .repeat(N, 1)
    score = jax.nn.sigmoid(
        -jnp.linalg.norm(h_exp + r_exp - t_exp, axis=1).reshape(-1, R))
    return score


if __name__ == "__main__":
    key = jax.random.PRNGKey(0)
    k_model, k_c1, k_c2 = jax.random.split(key, 3)

    num_nodes = 64
    in_size = 64
    hidden_dim = 32
    label_num = 8
    batch = 16

    model = GraphScoreEncoderPallas(
        k_model, num_nodes, in_size, hidden_dim, label_num,
        score_func="TransE", dropout=0.5)

    cui1 = jax.random.randint(k_c1, (batch,), 0, num_nodes, dtype=jnp.int32)
    cui2 = jax.random.randint(k_c2, (batch,), 0, num_nodes, dtype=jnp.int32)

    score = jax.block_until_ready(model(cui1, cui2))
    ref = reference_forward(model, cui1, cui2)

    assert score.shape == (batch, label_num)
    # bf16 MXU operands (projection + cross term) round relative to the f32
    # reference; behind the sigmoid the observed relative error is ~1e-2, so the
    # check uses a 10% relative / 1e-6 absolute tolerance.
    ok = jnp.allclose(score, ref, rtol=1e-1, atol=1e-6)
    assert bool(ok), (
        f"max abs err = {jnp.max(jnp.abs(score - ref))}, "
        f"max rel err = {jnp.max(jnp.abs(score - ref) / (jnp.abs(ref) + 1e-9))}")

    print("KERNEL_OK")
</pallas_src>

<mosaic_0001>
module attributes {stable_mosaic.version = 11 : i64} {
  func.func @node_proj_kernel(%arg0: i32, %arg1: memref<64x64xf32, #tpu.memory_space<vmem>>, %arg2: memref<64x128xbf16, #tpu.memory_space<vmem>>, %arg3: memref<64x128xf32, #tpu.memory_space<vmem>>) attributes {dimension_semantics = [#tpu.dimension_semantics<parallel>], iteration_bounds = array<i64: 1>, scalar_prefetch = 0 : i64, scratch_operands = 0 : i64, tpu.core_type = #tpu.core_type<tc>, window_params = [{transform_indices = @transform_0, window_bounds = array<i64: 64, 64>}, {pipeline_mode = #tpu.pipeline_mode<synchronous>, transform_indices = @transform_1, window_bounds = array<i64: 64, 128>}, {transform_indices = @transform_2, window_bounds = array<i64: 64, 128>}]} {
    %c0 = arith.constant 0 : index
    %c0_0 = arith.constant 0 : index
    %0 = vector.load %arg1[%c0, %c0_0] : memref<64x64xf32, #tpu.memory_space<vmem>>, vector<64x64xf32>
    %1 = arith.truncf %0 : vector<64x64xf32> to vector<64x64xbf16>
    %c0_1 = arith.constant 0 : index
    %c0_2 = arith.constant 0 : index
    %2 = vector.load %arg2[%c0_1, %c0_2] : memref<64x128xbf16, #tpu.memory_space<vmem>>, vector<64x128xbf16>
    %cst = arith.constant dense<0.000000e+00> : vector<64x128xf32>
    %3 = tpu.matmul %1, %2, %cst {dimension_numbers = #tpu.dot_dimension_numbers<[1], [0], [0], [1], [0, 0, 1, 1], [], []>} : vector<64x64xbf16>, vector<64x128xbf16>, vector<64x128xf32> -> vector<64x128xf32>
    %c0_3 = arith.constant 0 : index
    %c0_4 = arith.constant 0 : index
    %4 = vector.load %arg3[%c0_3, %c0_4] : memref<64x128xf32, #tpu.memory_space<vmem>>, vector<64x128xf32>
    tpu.vector_store %arg3[%c0_3, %c0_4], %3 {strides = array<i32>} : memref<64x128xf32, #tpu.memory_space<vmem>>, vector<64x128xf32>,
    return
  }
  func.func @transform_0(%arg0: i32) -> (i32, i32) {
    %c0_i32 = arith.constant 0 : i32
    %c0_i32_0 = arith.constant 0 : i32
    return %arg0, %c0_i32 : i32, i32
  }
  func.func @transform_1(%arg0: i32) -> (i32, i32) {
    %c0_i32 = arith.constant 0 : i32
    %c0_i32_0 = arith.constant 0 : i32
    %c0_i32_1 = arith.constant 0 : i32
    return %c0_i32, %c0_i32_0 : i32, i32
  }
  func.func @transform_2(%arg0: i32) -> (i32, i32) {
    %c0_i32 = arith.constant 0 : i32
    %c0_i32_0 = arith.constant 0 : i32
    return %arg0, %c0_i32 : i32, i32
  }
}

module attributes {stable_mosaic.version = 11 : i64} {
  func.func @node_proj_kernel(%arg0: i32, %arg1: memref<64x64xf32, #tpu.memory_space<vmem>>, %arg2: memref<64x128xbf16, #tpu.memory_space<vmem>>, %arg3: memref<64x128xf32, #tpu.memory_space<vmem>>) attributes {dimension_semantics = [#tpu.dimension_semantics<parallel>], iteration_bounds = array<i64: 1>, scalar_prefetch = 0 : i64, scratch_operands = 0 : i64, tpu.core_type = #tpu.core_type<tc>, window_params = [{transform_indices = @transform_0, window_bounds = array<i64: 64, 64>}, {pipeline_mode = #tpu.pipeline_mode<synchronous>, transform_indices = @transform_1, window_bounds = array<i64: 64, 128>}, {transform_indices = @transform_2, window_bounds = array<i64: 64, 128>}]} {
    %c0 = arith.constant 0 : index
    %c0_0 = arith.constant 0 : index
    %0 = vector.load %arg1[%c0, %c0_0] : memref<64x64xf32, #tpu.memory_space<vmem>>, vector<64x64xf32>
    %1 = arith.truncf %0 : vector<64x64xf32> to vector<64x64xbf16>
    %c0_1 = arith.constant 0 : index
    %c0_2 = arith.constant 0 : index
    %2 = vector.load %arg2[%c0_1, %c0_2] : memref<64x128xbf16, #tpu.memory_space<vmem>>, vector<64x128xbf16>
    %cst = arith.constant dense<0.000000e+00> : vector<64x128xf32>
    %3 = tpu.matmul %1, %2, %cst {dimension_numbers = #tpu.dot_dimension_numbers<[1], [0], [0], [1], [0, 0, 1, 1], [], []>} : vector<64x64xbf16>, vector<64x128xbf16>, vector<64x128xf32> -> vector<64x128xf32>
    %c0_3 = arith.constant 0 : index
    %c0_4 = arith.constant 0 : index
    %4 = vector.load %arg3[%c0_3, %c0_4] : memref<64x128xf32, #tpu.memory_space<vmem>>, vector<64x128xf32>
    tpu.vector_store %arg3[%c0_3, %c0_4], %3 {strides = array<i32>} : memref<64x128xf32, #tpu.memory_space<vmem>>, vector<64x128xf32>,
    return
  }
  func.func @transform_0(%arg0: i32) -> (i32, i32) {
    %c0_i32 = arith.constant 0 : i32
    %c0_i32_0 = arith.constant 0 : i32
    return %arg0, %c0_i32 : i32, i32
  }
  func.func @transform_1(%arg0: i32) -> (i32, i32) {
    %c0_i32 = arith.constant 0 : i32
    %c0_i32_0 = arith.constant 0 : i32
    %c0_i32_1 = arith.constant 0 : i32
    return %c0_i32, %c0_i32_0 : i32, i32
  }
  func.func @transform_2(%arg0: i32) -> (i32, i32) {
    %c0_i32 = arith.constant 0 : i32
    %c0_i32_0 = arith.constant 0 : i32
    return %arg0, %c0_i32 : i32, i32
  }
}

</mosaic_0001>

<llo_original>
// kernel: tpu_custom_call.1
$region0: #{tpu_custom_call.1}
  #allocation0 [shape = 'u32[]', space=smem, size = 0x4, offset = 0x4, fixed_abs, tag = 'smem constant byte address 0x4 - core index']
  #allocation1 [shape = 'u32[144,128]{1,0:T(1,128)}', space=vmem, size = 0x12000, scoped, tag = 'internal scratch']
  %s0 = inlined_call_operand.hbm [shape: f32[64,64], index: 0, kind: input, shape index: {}]
  %s1 = inlined_call_operand.hbm [shape: bf16[64,128], index: 1, kind: input, shape index: {}]
  %s2 = inlined_call_operand.hbm [shape: f32[64,128], index: 2, kind: output, shape index: {}]
  %s3 = sld [smem:[#allocation0]]
  $region26: #{tpu_custom_call.1} parent=0
    _
  %s5 = ssub.s32 1, %s3
  %s6 = scalar_select 0, %s5, %s3
  $region1: #{tpu_custom_call.1} parent=0
    #allocation2 [shape = 'u8[32768]{0}', space=vmem, size = 0x8000, scoped, tag = 'input window, operand 0, single buffered']
    #allocation3 [shape = 's32[1]{0}', space=sflag, size = 0x4, scoped, tag = 'scoped memory for tpu_custom_call.1']
    #allocation4 [shape = 's32[1]{0}', space=sflag, size = 0x4, scoped, tag = 'scoped memory for tpu_custom_call.1']
    #allocation5 [shape = 'u8[16384]{0}', space=vmem, size = 0x4000, scoped, tag = 'input window, operand 1, single buffered']
    #allocation6 [shape = 's32[1]{0}', space=sflag, size = 0x4, scoped, tag = 'scoped memory for tpu_custom_call.1']
    #allocation7 [shape = 'u8[32768]{0}', space=vmem, size = 0x8000, scoped, tag = 'output window, operand 0, single buffered']
    %7 = vsyncpa [#allocation3], 0
    %8 = vsyncpa [#allocation6], 0
    %9 = vsyncpa [#allocation4], 0
    // Predicated region
    $region2: #{tpu_custom_call.1} parent=1 // pred_check
      _
    $region3: #{tpu_custom_call.1} parent=1 // pred_check_branch
      %11 = sbr.rel (0) target = $region5
    $region4: #{tpu_custom_call.1} parent=1 // pred_region
      %s13 = ssub.s32 1024, 1024
      %14 = vsyncadd [#allocation3], %s13
      %s15 = sshll.u32 [#allocation2], 4
      %s16 = int_to_ptr.vmem [resolvable:$true] %s15
      %21 = dma.hbm_to_vmem [thread:$0]  %s0, 1024, %s16, [#allocation3], 128, 128, 8
    $region5: #{tpu_custom_call.1} parent=1 // pred_fallthru
      _
    // Predicated region
    $region6: #{tpu_custom_call.1} parent=1 // pred_check
      _
    $region7: #{tpu_custom_call.1} parent=1 // pred_check_branch
      %23 = sbr.rel (0) target = $region9
    $region8: #{tpu_custom_call.1} parent=1 // pred_region
      %s25 = ssub.s32 512, 512
      %26 = vsyncadd [#allocation6], %s25
      %s27 = sshll.u32 [#allocation5], 4
      %s28 = int_to_ptr.vmem [resolvable:$true] %s27
      %33 = dma.hbm_to_vmem [thread:$0]  %s1, 512, %s28, [#allocation6], 64, 64, 4
    $region9: #{tpu_custom_call.1} parent=1 // pred_fallthru
      _
    // Predicated region
    $region10: #{tpu_custom_call.1} parent=1 // pred_check
      _
    $region11: #{tpu_custom_call.1} parent=1 // pred_check_branch
      %35 = sbr.rel (0) target = $region13
    $region12: #{tpu_custom_call.1} parent=1 // pred_region
      %36 = dma.done [#allocation3], 1024
    $region13: #{tpu_custom_call.1} parent=1 // pred_fallthru
      _
    // Predicated region
    $region14: #{tpu_custom_call.1} parent=1 // pred_check
      _
    $region15: #{tpu_custom_call.1} parent=1 // pred_check_branch
      %38 = sbr.rel (0) target = $region17
    $region16: #{tpu_custom_call.1} parent=1 // pred_region
      %39 = dma.done [#allocation6], 512
    $region17: #{tpu_custom_call.1} parent=1 // pred_fallthru
      _
    %v41 = vld [vmem:[#allocation2] sm:$0xff]
    %v42 = vld [vmem:[#allocation2 + $0x8] sm:$0xff]
    %v43 = vld [vmem:[#allocation2 + $0x10] sm:$0xff]
    %v44 = vld [vmem:[#allocation2 + $0x18] sm:$0xff]
    %v45 = vld [vmem:[#allocation2 + $0x20] sm:$0xff]
    %v46 = vld [vmem:[#allocation2 + $0x28] sm:$0xff]
    %v47 = vld [vmem:[#allocation2 + $0x30] sm:$0xff]
    %v48 = vld [vmem:[#allocation2 + $0x38] sm:$0xff]
    %v49 = vpack.c.bf16 %v42, %v41
    %v50 = vpack.c.bf16 %v44, %v43
    %v51 = vpack.c.bf16 %v46, %v45
    %v52 = vpack.c.bf16 %v48, %v47
    %v53 = vld [vmem:[#allocation5] sm:$0xf]
    %v54 = vld [vmem:[#allocation5 + $0x4] sm:$0xf]
    %v55 = vld [vmem:[#allocation5 + $0x8] sm:$0xf]
    %v56 = vld [vmem:[#allocation5 + $0xc] sm:$0xf]
    %v57 = vld [vmem:[#allocation5 + $0x10] sm:$0xf]
    %v58 = vld [vmem:[#allocation5 + $0x14] sm:$0xf]
    %v59 = vld [vmem:[#allocation5 + $0x18] sm:$0xf]
    %v60 = vld [vmem:[#allocation5 + $0x1c] sm:$0xf]
    %v69 = vunpack.c.l.b16 %v53
    %v70 = vunpack.c.l.b16 %v54
    %v71 = vunpack.c.l.b16 %v55
    %v72 = vunpack.c.l.b16 %v56
    %v73 = vunpack.c.l.b16 %v57
    %v74 = vunpack.c.l.b16 %v58
    %v75 = vunpack.c.l.b16 %v59
    %v76 = vunpack.c.l.b16 %v60
    %v77 = vpack.c.b16 %v70, %v69
    %v78 = vpack.c.b16 %v72, %v71
    %v79 = vpack.c.b16 %v74, %v73
    %v80 = vpack.c.b16 %v76, %v75
    %vm85 = vcmask 523264
    %v87 = vsel %vm85, %v49, 0
    %v90 = vsel %vm85, %v50, 0
    %v93 = vsel %vm85, %v51, 0
    %v96 = vsel %vm85, %v52, 0
    %98 = vmatprep.subr.bf16.mxu0 0
    %99 = vmatpush1.bf16.msra.mxu0 %v77
    %100 = vmatprep.subr.bf16.mxu0 0
    %101 = vmatpush1.bf16.msra.mxu0 %v78
    %102 = vmatprep.subr.bf16.mxu0 0
    %103 = vmatpush1.bf16.msra.mxu0 %v79
    %104 = vmatprep.subr.bf16.mxu0 0
    %105 = vmatpush1.bf16.msra.mxu0 %v80
    %106 = vmatprep.subr.bf16.mxu0 0
    %107 = vmatpush1.bf16.msra.mxu0 0
    %108 = vmatprep.subr.bf16.mxu0 0
    %109 = vmatpush1.bf16.msra.mxu0 0
    %110 = vmatprep.subr.bf16.mxu0 0
    %111 = vmatpush1.bf16.msra.mxu0 0
    %112 = vmatprep.subr.bf16.mxu0 0
    %113 = vmatpush1.bf16.msra.mxu0 0
    %114 = vmatprep.subr.bf16.mxu0 0
    %115 = vmatpush1.bf16.msra.mxu0 0
    %116 = vmatprep.subr.bf16.mxu0 0
    %117 = vmatpush1.bf16.msra.mxu0 0
    %118 = vmatprep.subr.bf16.mxu0 0
    %119 = vmatpush1.bf16.msra.mxu0 0
    %120 = vmatprep.subr.bf16.mxu0 0
    %121 = vmatpush1.bf16.msra.mxu0 0
    %122 = vmatprep.subr.bf16.mxu0 0
    %123 = vmatpush1.bf16.msra.mxu0 0
    %124 = vmatprep.subr.bf16.mxu0 0
    %125 = vmatpush1.bf16.msra.mxu0 0
    %126 = vmatprep.subr.bf16.mxu0 0
    %127 = vmatpush1.bf16.msra.mxu0 0
    %128 = vmatprep.subr.bf16.mxu0 0
    %129 = vmatpush1.bf16.msra.mxu0 0
    %130 = vmatprep.mubr.bf16.mxu0 0
    %131 = vmatmul.mubr.bf16.gmra.mrb[0].mxu0 %v87
    %v132 = vpop.f32.mrb[0].mxu0
    %v133 = vadd.f32 0.0, %v132
    %v134 = vpop.f32.mrb[0].mxu0
    %v135 = vpop.f32.mrb[0].mxu0
    %v136 = vadd.f32 0.0, %v135
    %v137 = vpop.f32.mrb[0].mxu0
    %138 = vmatprep.mubr.bf16.mxu0 0
    %139 = vmatmul.mubr.bf16.gmra.mrb[0].mxu0 %v90
    %v140 = vpop.f32.mrb[0].mxu0
    %v141 = vadd.f32 0.0, %v140
    %v142 = vpop.f32.mrb[0].mxu0
    %v143 = vpop.f32.mrb[0].mxu0
    %v144 = vadd.f32 0.0, %v143
    %v145 = vpop.f32.mrb[0].mxu0
    %146 = vmatprep.mubr.bf16.mxu0 0
    %147 = vmatmul.mubr.bf16.gmra.mrb[0].mxu0 %v93
    %v148 = vpop.f32.mrb[0].mxu0
    %v149 = vadd.f32 0.0, %v148
    %v150 = vpop.f32.mrb[0].mxu0
    %v151 = vpop.f32.mrb[0].mxu0
    %v152 = vadd.f32 0.0, %v151
    %v153 = vpop.f32.mrb[0].mxu0
    %154 = vmatprep.mubr.bf16.mxu0 0
    %155 = vmatmul.mubr.bf16.gmra.mrb[0].mxu0 %v96
    %v156 = vpop.f32.mrb[0].mxu0
    %v157 = vadd.f32 0.0, %v156
    %v158 = vpop.f32.mrb[0].mxu0
    %v159 = vpop.f32.mrb[0].mxu0
    %v160 = vadd.f32 0.0, %v159
    %v161 = vpop.f32.mrb[0].mxu0
    %162 = vdwg.mxu0
    %163 = vst [vmem:[#allocation7] sm:$0xff] %v133
    %164 = vst [vmem:[#allocation7 + $0x8] sm:$0xff] %v136
    %165 = vst [vmem:[#allocation7 + $0x10] sm:$0xff] %v141
    %166 = vst [vmem:[#allocation7 + $0x18] sm:$0xff] %v144
    %167 = vst [vmem:[#allocation7 + $0x20] sm:$0xff] %v149
    %168 = vst [vmem:[#allocation7 + $0x28] sm:$0xff] %v152
    %169 = vst [vmem:[#allocation7 + $0x30] sm:$0xff] %v157
    %170 = vst [vmem:[#allocation7 + $0x38] sm:$0xff] %v160
    // Predicated region
    $region18: #{tpu_custom_call.1} parent=1 // pred_check
      _
    $region19: #{tpu_custom_call.1} parent=1 // pred_check_branch
      %172 = sbr.rel (0) target = $region21
    $region20: #{tpu_custom_call.1} parent=1 // pred_region
      %s174 = ssub.s32 1024, 1024
      %175 = vsyncadd [#allocation4], %s174
      %s176 = sshll.u32 [#allocation7], 4
      %s177 = int_to_ptr.vmem [resolvable:$true] %s176
      %182 = dma.vmem_to_hbm [thread:$0]  %s177, 1024, %s2, [#allocation4], 128, 128, 8
    $region21: #{tpu_custom_call.1} parent=1 // pred_fallthru
      _
    // Predicated region
    $region22: #{tpu_custom_call.1} parent=1 // pred_check
      _
    $region23: #{tpu_custom_call.1} parent=1 // pred_check_branch
      %184 = sbr.rel (0) target = $region25
    $region24: #{tpu_custom_call.1} parent=1 // pred_region
      %185 = dma.done [#allocation4], 1024
    $region25: #{tpu_custom_call.1} parent=1 // pred_fallthru
      _
    %186 = vsyncpa [#allocation3], 1
    %187 = vsyncpa [#allocation6], 1
    %188 = vsyncpa [#allocation4], 1

// kernel: tpu_custom_call.1
$region0: #{tpu_custom_call.1}
  #allocation0 [shape = 'u32[]', space=smem, size = 0x4, offset = 0x4, fixed_abs, tag = 'smem constant byte address 0x4 - core index']
  #allocation1 [shape = 'u32[144,128]{1,0:T(1,128)}', space=vmem, size = 0x12000, scoped, tag = 'internal scratch']
  %s0 = inlined_call_operand.hbm [shape: f32[64,64], index: 0, kind: input, shape index: {}]
  %s1 = inlined_call_operand.hbm [shape: bf16[64,128], index: 1, kind: input, shape index: {}]
  %s2 = inlined_call_operand.hbm [shape: f32[64,128], index: 2, kind: output, shape index: {}]
  %s3 = sld [smem:[#allocation0]]
  $region26: #{tpu_custom_call.1} parent=0
    _
  %s5 = ssub.s32 1, %s3
  %s6 = scalar_select 0, %s5, %s3
  $region1: #{tpu_custom_call.1} parent=0
    #allocation2 [shape = 'u8[32768]{0}', space=vmem, size = 0x8000, scoped, tag = 'input window, operand 0, single buffered']
    #allocation3 [shape = 's32[1]{0}', space=sflag, size = 0x4, scoped, tag = 'scoped memory for tpu_custom_call.1']
    #allocation4 [shape = 's32[1]{0}', space=sflag, size = 0x4, scoped, tag = 'scoped memory for tpu_custom_call.1']
    #allocation5 [shape = 'u8[16384]{0}', space=vmem, size = 0x4000, scoped, tag = 'input window, operand 1, single buffered']
    #allocation6 [shape = 's32[1]{0}', space=sflag, size = 0x4, scoped, tag = 'scoped memory for tpu_custom_call.1']
    #allocation7 [shape = 'u8[32768]{0}', space=vmem, size = 0x8000, scoped, tag = 'output window, operand 0, single buffered']
    %7 = vsyncpa [#allocation3], 0
    %8 = vsyncpa [#allocation6], 0
    %9 = vsyncpa [#allocation4], 0
    // Predicated region
    $region2: #{tpu_custom_call.1} parent=1 // pred_check
      _
    $region3: #{tpu_custom_call.1} parent=1 // pred_check_branch
      %11 = sbr.rel (0) target = $region5
    $region4: #{tpu_custom_call.1} parent=1 // pred_region
      %s13 = ssub.s32 1024, 1024
      %14 = vsyncadd [#allocation3], %s13
      %s15 = sshll.u32 [#allocation2], 4
      %s16 = int_to_ptr.vmem [resolvable:$true] %s15
      %21 = dma.hbm_to_vmem [thread:$0]  %s0, 1024, %s16, [#allocation3], 128, 128, 8
    $region5: #{tpu_custom_call.1} parent=1 // pred_fallthru
      _
    // Predicated region
    $region6: #{tpu_custom_call.1} parent=1 // pred_check
      _
    $region7: #{tpu_custom_call.1} parent=1 // pred_check_branch
      %23 = sbr.rel (0) target = $region9
    $region8: #{tpu_custom_call.1} parent=1 // pred_region
      %s25 = ssub.s32 512, 512
      %26 = vsyncadd [#allocation6], %s25
      %s27 = sshll.u32 [#allocation5], 4
      %s28 = int_to_ptr.vmem [resolvable:$true] %s27
      %33 = dma.hbm_to_vmem [thread:$0]  %s1, 512, %s28, [#allocation6], 64, 64, 4
    $region9: #{tpu_custom_call.1} parent=1 // pred_fallthru
      _
    // Predicated region
    $region10: #{tpu_custom_call.1} parent=1 // pred_check
      _
    $region11: #{tpu_custom_call.1} parent=1 // pred_check_branch
      %35 = sbr.rel (0) target = $region13
    $region12: #{tpu_custom_call.1} parent=1 // pred_region
      %36 = dma.done [#allocation3], 1024
    $region13: #{tpu_custom_call.1} parent=1 // pred_fallthru
      _
    // Predicated region
    $region14: #{tpu_custom_call.1} parent=1 // pred_check
      _
    $region15: #{tpu_custom_call.1} parent=1 // pred_check_branch
      %38 = sbr.rel (0) target = $region17
    $region16: #{tpu_custom_call.1} parent=1 // pred_region
      %39 = dma.done [#allocation6], 512
    $region17: #{tpu_custom_call.1} parent=1 // pred_fallthru
      _
    %v41 = vld [vmem:[#allocation2] sm:$0xff]
    %v42 = vld [vmem:[#allocation2 + $0x8] sm:$0xff]
    %v43 = vld [vmem:[#allocation2 + $0x10] sm:$0xff]
    %v44 = vld [vmem:[#allocation2 + $0x18] sm:$0xff]
    %v45 = vld [vmem:[#allocation2 + $0x20] sm:$0xff]
    %v46 = vld [vmem:[#allocation2 + $0x28] sm:$0xff]
    %v47 = vld [vmem:[#allocation2 + $0x30] sm:$0xff]
    %v48 = vld [vmem:[#allocation2 + $0x38] sm:$0xff]
    %v49 = vpack.c.bf16 %v42, %v41
    %v50 = vpack.c.bf16 %v44, %v43
    %v51 = vpack.c.bf16 %v46, %v45
    %v52 = vpack.c.bf16 %v48, %v47
    %v53 = vld [vmem:[#allocation5] sm:$0xf]
    %v54 = vld [vmem:[#allocation5 + $0x4] sm:$0xf]
    %v55 = vld [vmem:[#allocation5 + $0x8] sm:$0xf]
    %v56 = vld [vmem:[#allocation5 + $0xc] sm:$0xf]
    %v57 = vld [vmem:[#allocation5 + $0x10] sm:$0xf]
    %v58 = vld [vmem:[#allocation5 + $0x14] sm:$0xf]
    %v59 = vld [vmem:[#allocation5 + $0x18] sm:$0xf]
    %v60 = vld [vmem:[#allocation5 + $0x1c] sm:$0xf]
    %v69 = vunpack.c.l.b16 %v53
    %v70 = vunpack.c.l.b16 %v54
    %v71 = vunpack.c.l.b16 %v55
    %v72 = vunpack.c.l.b16 %v56
    %v73 = vunpack.c.l.b16 %v57
    %v74 = vunpack.c.l.b16 %v58
    %v75 = vunpack.c.l.b16 %v59
    %v76 = vunpack.c.l.b16 %v60
    %v77 = vpack.c.b16 %v70, %v69
    %v78 = vpack.c.b16 %v72, %v71
    %v79 = vpack.c.b16 %v74, %v73
    %v80 = vpack.c.b16 %v76, %v75
    %vm85 = vcmask 523264
    %v87 = vsel %vm85, %v49, 0
    %v90 = vsel %vm85, %v50, 0
    %v93 = vsel %vm85, %v51, 0
    %v96 = vsel %vm85, %v52, 0
    %98 = vmatprep.subr.bf16.mxu0 0
    %99 = vmatpush1.bf16.msra.mxu0 %v77
    %100 = vmatprep.subr.bf16.mxu0 0
    %101 = vmatpush1.bf16.msra.mxu0 %v78
    %102 = vmatprep.subr.bf16.mxu0 0
    %103 = vmatpush1.bf16.msra.mxu0 %v79
    %104 = vmatprep.subr.bf16.mxu0 0
    %105 = vmatpush1.bf16.msra.mxu0 %v80
    %106 = vmatprep.subr.bf16.mxu0 0
    %107 = vmatpush1.bf16.msra.mxu0 0
    %108 = vmatprep.subr.bf16.mxu0 0
    %109 = vmatpush1.bf16.msra.mxu0 0
    %110 = vmatprep.subr.bf16.mxu0 0
    %111 = vmatpush1.bf16.msra.mxu0 0
    %112 = vmatprep.subr.bf16.mxu0 0
    %113 = vmatpush1.bf16.msra.mxu0 0
    %114 = vmatprep.subr.bf16.mxu0 0
    %115 = vmatpush1.bf16.msra.mxu0 0
    %116 = vmatprep.subr.bf16.mxu0 0
    %117 = vmatpush1.bf16.msra.mxu0 0
    %118 = vmatprep.subr.bf16.mxu0 0
    %119 = vmatpush1.bf16.msra.mxu0 0
    %120 = vmatprep.subr.bf16.mxu0 0
    %121 = vmatpush1.bf16.msra.mxu0 0
    %122 = vmatprep.subr.bf16.mxu0 0
    %123 = vmatpush1.bf16.msra.mxu0 0
    %124 = vmatprep.subr.bf16.mxu0 0
    %125 = vmatpush1.bf16.msra.mxu0 0
    %126 = vmatprep.subr.bf16.mxu0 0
    %127 = vmatpush1.bf16.msra.mxu0 0
    %128 = vmatprep.subr.bf16.mxu0 0
    %129 = vmatpush1.bf16.msra.mxu0 0
    %130 = vmatprep.mubr.bf16.mxu0 0
    %131 = vmatmul.mubr.bf16.gmra.mrb[0].mxu0 %v87
    %v132 = vpop.f32.mrb[0].mxu0
    %v133 = vadd.f32 0.0, %v132
    %v134 = vpop.f32.mrb[0].mxu0
    %v135 = vpop.f32.mrb[0].mxu0
    %v136 = vadd.f32 0.0, %v135
    %v137 = vpop.f32.mrb[0].mxu0
    %138 = vmatprep.mubr.bf16.mxu0 0
    %139 = vmatmul.mubr.bf16.gmra.mrb[0].mxu0 %v90
    %v140 = vpop.f32.mrb[0].mxu0
    %v141 = vadd.f32 0.0, %v140
    %v142 = vpop.f32.mrb[0].mxu0
    %v143 = vpop.f32.mrb[0].mxu0
    %v144 = vadd.f32 0.0, %v143
    %v145 = vpop.f32.mrb[0].mxu0
    %146 = vmatprep.mubr.bf16.mxu0 0
    %147 = vmatmul.mubr.bf16.gmra.mrb[0].mxu0 %v93
    %v148 = vpop.f32.mrb[0].mxu0
    %v149 = vadd.f32 0.0, %v148
    %v150 = vpop.f32.mrb[0].mxu0
    %v151 = vpop.f32.mrb[0].mxu0
    %v152 = vadd.f32 0.0, %v151
    %v153 = vpop.f32.mrb[0].mxu0
    %154 = vmatprep.mubr.bf16.mxu0 0
    %155 = vmatmul.mubr.bf16.gmra.mrb[0].mxu0 %v96
    %v156 = vpop.f32.mrb[0].mxu0
    %v157 = vadd.f32 0.0, %v156
    %v158 = vpop.f32.mrb[0].mxu0
    %v159 = vpop.f32.mrb[0].mxu0
    %v160 = vadd.f32 0.0, %v159
    %v161 = vpop.f32.mrb[0].mxu0
    %162 = vdwg.mxu0
    %163 = vst [vmem:[#allocation7] sm:$0xff] %v133
    %164 = vst [vmem:[#allocation7 + $0x8] sm:$0xff] %v136
    %165 = vst [vmem:[#allocation7 + $0x10] sm:$0xff] %v141
    %166 = vst [vmem:[#allocation7 + $0x18] sm:$0xff] %v144
    %167 = vst [vmem:[#allocation7 + $0x20] sm:$0xff] %v149
    %168 = vst [vmem:[#allocation7 + $0x28] sm:$0xff] %v152
    %169 = vst [vmem:[#allocation7 + $0x30] sm:$0xff] %v157
    %170 = vst [vmem:[#allocation7 + $0x38] sm:$0xff] %v160
    // Predicated region
    $region18: #{tpu_custom_call.1} parent=1 // pred_check
      _
    $region19: #{tpu_custom_call.1} parent=1 // pred_check_branch
      %172 = sbr.rel (0) target = $region21
    $region20: #{tpu_custom_call.1} parent=1 // pred_region
      %s174 = ssub.s32 1024, 1024
      %175 = vsyncadd [#allocation4], %s174
      %s176 = sshll.u32 [#allocation7], 4
      %s177 = int_to_ptr.vmem [resolvable:$true] %s176
      %182 = dma.vmem_to_hbm [thread:$0]  %s177, 1024, %s2, [#allocation4], 128, 128, 8
    $region21: #{tpu_custom_call.1} parent=1 // pred_fallthru
      _
    // Predicated region
    $region22: #{tpu_custom_call.1} parent=1 // pred_check
      _
    $region23: #{tpu_custom_call.1} parent=1 // pred_check_branch
      %184 = sbr.rel (0) target = $region25
    $region24: #{tpu_custom_call.1} parent=1 // pred_region
      %185 = dma.done [#allocation4], 1024
    $region25: #{tpu_custom_call.1} parent=1 // pred_fallthru
      _
    %186 = vsyncpa [#allocation3], 1
    %187 = vsyncpa [#allocation6], 1
    %188 = vsyncpa [#allocation4], 1

</llo_original>
